<compile_context>
chip_gen: v6e
topology: v6e:2x2x1
jax: 0.10.0
libtpu: 0.0.40
codegen_flags: <defaults>
</compile_context>

<pallas_src>
import jax
import jax.numpy as jnp
from jax.experimental import pallas as pl
from jax.experimental.pallas import tpu as pltpu


def _binary_classifier_kernel(x_ref, w_ref, b_ref, o_ref):
    # x_ref: (TB, C) VMEM (native dtype); w_ref: (1, C) VMEM, resident across tiles;
    # b_ref: (1, 1) f32 SMEM scalar; o_ref: (TB, 1) f32 VMEM.
    x = x_ref[...].astype(jnp.float32)          # dropout(eval) == identity
    w = w_ref[...].astype(jnp.float32)          # (1, C) broadcasts over rows
    b = b_ref[0, 0]
    # VPU elementwise multiply + XLU lane reduction (avoids an N=1 MXU matmul).
    y = jnp.sum(x * w, axis=-1, keepdims=True) + b
    o_ref[...] = y.astype(o_ref.dtype)


def binary_classifier_forward(x, weight, bias, *, block_batch=512):
    """x: (B, C); weight: (1, C) as in torch nn.Linear; bias: (1,). Returns (B, 1) f32."""
    B, C = x.shape

    # Largest batch tile that fits; keep it a multiple of 8 (sublane) unless it is full B.
    tb = min(block_batch, B)
    if tb != B:
        tb = max(8, (tb // 8) * 8)
    grid = (pl.cdiv(B, tb),)

    w = weight.reshape(1, C)                        # lane-dense, DMA'd once, VMEM-resident
    b = bias.reshape(1, 1).astype(jnp.float32)      # scalar in SMEM

    # Double-buffered x tiles + resident weight + output tiles, with generous headroom.
    itemsize = jnp.dtype(x.dtype).itemsize
    needed = 2 * (2 * tb * C * itemsize) + 4 * C + 2 * tb * 4 + (4 << 20)
    vmem_limit = int(min(max(needed, 8 << 20), 32 << 20))

    return pl.pallas_call(
        _binary_classifier_kernel,
        out_shape=jax.ShapeDtypeStruct((B, 1), jnp.float32),
        grid=grid,
        in_specs=[
            pl.BlockSpec((tb, C), lambda i: (i, 0)),                    # x: batch-tiled
            pl.BlockSpec((1, C), lambda i: (0, 0)),                     # weight: resident
            pl.BlockSpec(memory_space=pltpu.MemorySpace.SMEM),          # bias: scalar
        ],
        out_specs=pl.BlockSpec((tb, 1), lambda i: (i, 0)),
        compiler_params=pltpu.CompilerParams(
            dimension_semantics=("parallel",),
            vmem_limit_bytes=vmem_limit,
        ),
    )(x, w, b)


if __name__ == "__main__":
    key = jax.random.PRNGKey(0)
    k_x, k_w, k_b, k_x2 = jax.random.split(key, 4)

    batch, in_channels = 8, 32

    # Deterministic inputs / parameters.
    x = jax.random.normal(k_x, (batch, in_channels), dtype=jnp.float32)

    # Xavier (Glorot) normal init for the Linear weight, gain=1:
    # std = gain * sqrt(2 / (fan_in + fan_out)), fan_in=in_channels, fan_out=1.
    std = (2.0 / (in_channels + 1)) ** 0.5
    weight = std * jax.random.normal(k_w, (1, in_channels), dtype=jnp.float32)
    # nn.Linear default bias init: U(-1/sqrt(fan_in), 1/sqrt(fan_in)).
    bound = 1.0 / (in_channels ** 0.5)
    bias = jax.random.uniform(k_b, (1,), minval=-bound, maxval=bound,
                              dtype=jnp.float32)

    # Single-tile path (TB == B).
    out = binary_classifier_forward(x, weight, bias)
    out = jax.block_until_ready(out)
    ref = x @ weight.T + bias
    assert out.shape == (batch, 1)
    assert jnp.allclose(out, ref, atol=1e-5, rtol=1e-5)

    # Multi-tile path (grid > 1) to exercise the batch-tiled pipeline.
    x2 = jax.random.normal(k_x2, (64, in_channels), dtype=jnp.float32)
    out2 = binary_classifier_forward(x2, weight, bias, block_batch=16)
    out2 = jax.block_until_ready(out2)
    ref2 = x2 @ weight.T + bias
    assert out2.shape == (64, 1)
    assert jnp.allclose(out2, ref2, atol=1e-5, rtol=1e-5)

    print("KERNEL_OK")
</pallas_src>

<mosaic_0001>
module attributes {stable_mosaic.version = 11 : i64} {
  func.func @_binary_classifier_kernel(%arg0: i32, %arg1: memref<8x32xf32, #tpu.memory_space<vmem>>, %arg2: memref<1x32xf32, #tpu.memory_space<vmem>>, %arg3: memref<1x1xf32, #tpu.memory_space<smem>>, %arg4: memref<8x1xf32, #tpu.memory_space<vmem>>) attributes {dimension_semantics = [#tpu.dimension_semantics<parallel>], iteration_bounds = array<i64: 1>, scalar_prefetch = 0 : i64, scratch_operands = 0 : i64, tpu.core_type = #tpu.core_type<tc>, window_params = [{transform_indices = @transform_0, window_bounds = array<i64: 8, 32>}, {pipeline_mode = #tpu.pipeline_mode<synchronous>, transform_indices = @transform_1, window_bounds = array<i64: 1, 32>}, {transform_indices = @transform_2, window_bounds = array<i64: 1, 1>}, {transform_indices = @transform_3, window_bounds = array<i64: 8, 1>}]} {
    %c0 = arith.constant 0 : index
    %c0_0 = arith.constant 0 : index
    %0 = vector.load %arg1[%c0, %c0_0] : memref<8x32xf32, #tpu.memory_space<vmem>>, vector<8x32xf32>
    %c0_1 = arith.constant 0 : index
    %c0_2 = arith.constant 0 : index
    %1 = vector.load %arg2[%c0_1, %c0_2] : memref<1x32xf32, #tpu.memory_space<vmem>>, vector<1x32xf32>
    %c0_3 = arith.constant 0 : index
    %c0_4 = arith.constant 0 : index
    %2 = memref.load %arg3[%c0_3, %c0_4] : memref<1x1xf32, #tpu.memory_space<smem>>
    %3 = vector.broadcast %1 : vector<1x32xf32> to vector<8x32xf32>
    %4 = arith.mulf %0, %3 : vector<8x32xf32>
    %cst = arith.constant dense<0.000000e+00> : vector<8xf32>
    %5 = vector.multi_reduction <add>, %4, %cst [1] : vector<8x32xf32> to vector<8xf32>
    %6 = vector.shape_cast %5 : vector<8xf32> to vector<8x1xf32>
    %7 = vector.broadcast %2 : f32 to vector<8x1xf32>
    %8 = arith.addf %6, %7 : vector<8x1xf32>
    %c0_5 = arith.constant 0 : index
    %c0_6 = arith.constant 0 : index
    %9 = vector.load %arg4[%c0_5, %c0_6] : memref<8x1xf32, #tpu.memory_space<vmem>>, vector<8x1xf32>
    tpu.vector_store %arg4[%c0_5, %c0_6], %8 {strides = array<i32>} : memref<8x1xf32, #tpu.memory_space<vmem>>, vector<8x1xf32>,
    return
  }
  func.func @transform_0(%arg0: i32) -> (i32, i32) {
    %c0_i32 = arith.constant 0 : i32
    %c0_i32_0 = arith.constant 0 : i32
    return %arg0, %c0_i32 : i32, i32
  }
  func.func @transform_1(%arg0: i32) -> (i32, i32) {
    %c0_i32 = arith.constant 0 : i32
    %c0_i32_0 = arith.constant 0 : i32
    %c0_i32_1 = arith.constant 0 : i32
    return %c0_i32, %c0_i32_0 : i32, i32
  }
  func.func @transform_2(%arg0: i32) -> (i32, i32) {
    %c0_i32 = arith.constant 0 : i32
    %c0_i32_0 = arith.constant 0 : i32
    %c0_i32_1 = arith.constant 0 : i32
    return %c0_i32, %c0_i32_0 : i32, i32
  }
  func.func @transform_3(%arg0: i32) -> (i32, i32) {
    %c0_i32 = arith.constant 0 : i32
    %c0_i32_0 = arith.constant 0 : i32
    return %arg0, %c0_i32 : i32, i32
  }
}

</mosaic_0001>

<llo_original>
// kernel: tpu_custom_call.1
$region0: #{tpu_custom_call.1}
  #allocation0 [shape = 'u32[]', space=smem, size = 0x4, offset = 0x4, fixed_abs, tag = 'smem constant byte address 0x4 - core index']
  #allocation1 [shape = 'u32[144,128]{1,0:T(1,128)}', space=vmem, size = 0x12000, scoped, tag = 'internal scratch']
  #allocation2 [shape = 'f32[1,1]{1,0:T(1,128)S(6)}', space=smem, size = 0x200, scoped, tag = 'scoped memory for tpu_custom_call.1']
  %s0 = inlined_call_operand.hbm [shape: f32[8,32], index: 0, kind: input, shape index: {}]
  %s1 = inlined_call_operand.vmem [shape: f32[1,32], index: 1, kind: input, shape index: {}]
  %s2 = inlined_call_operand.<no memory space> [shape: f32[1,1], index: 2, kind: input, shape index: {}]
  %s3 = inlined_call_operand.vmem [shape: f32[8,1], index: 3, kind: output, shape index: {}]
  %s4 = sld [smem:[#allocation0]]
  $region26: #{tpu_custom_call.1} parent=0
    _
  %s6 = ssub.s32 1, %s4
  %s7 = scalar_select 0, %s6, %s4
  %8 = sst [smem:[#allocation2]] %s2
  $region1: #{tpu_custom_call.1} parent=0
    #allocation3 [shape = 'u8[4096]{0}', space=vmem, size = 0x1000, scoped, tag = 'input window, operand 0, single buffered']
    #allocation4 [shape = 's32[1]{0}', space=sflag, size = 0x4, scoped, tag = 'scoped memory for tpu_custom_call.1']
    %9 = vsyncpa [#allocation4], 0
    // Predicated region
    $region2: #{tpu_custom_call.1} parent=1 // pred_check
      _
    $region3: #{tpu_custom_call.1} parent=1 // pred_check_branch
      %11 = sbr.rel (0) target = $region5
    $region4: #{tpu_custom_call.1} parent=1 // pred_region
      %s13 = ssub.s32 128, 128
      %14 = vsyncadd [#allocation4], %s13
      %s16 = sshll.u32 [#allocation3], 4
      %s17 = int_to_ptr.vmem [resolvable:$true] %s16
      %19 = dma.hbm_to_vmem [thread:$0]  %s0, 128, %s17, [#allocation4]
    $region5: #{tpu_custom_call.1} parent=1 // pred_fallthru
      _
    // Predicated region
    $region6: #{tpu_custom_call.1} parent=1 // pred_check
      _
    $region7: #{tpu_custom_call.1} parent=1 // pred_check_branch
      %21 = sbr.rel (0) target = $region9
    $region8: #{tpu_custom_call.1} parent=1 // pred_region
      _
    $region9: #{tpu_custom_call.1} parent=1 // pred_fallthru
      _
    // Predicated region
    $region10: #{tpu_custom_call.1} parent=1 // pred_check
      _
    $region11: #{tpu_custom_call.1} parent=1 // pred_check_branch
      %23 = sbr.rel (0) target = $region13
    $region12: #{tpu_custom_call.1} parent=1 // pred_region
      _
    $region13: #{tpu_custom_call.1} parent=1 // pred_fallthru
      _
    // Predicated region
    $region14: #{tpu_custom_call.1} parent=1 // pred_check
      _
    $region15: #{tpu_custom_call.1} parent=1 // pred_check_branch
      %25 = sbr.rel (0) target = $region17
    $region16: #{tpu_custom_call.1} parent=1 // pred_region
      %26 = dma.done [#allocation4], 128
    $region17: #{tpu_custom_call.1} parent=1 // pred_fallthru
      _
    %v27 = vld [vmem:[#allocation3] sm:$0xff]
    %v28 = vld [vmem:[%s1] sm:$0x1]
    %s29 = sld [smem:[#allocation2]]
    %v31 = vlaneseq
    %v32 = vshrl.u32 %v31, 7
    %v33 = vsub.s32 0, %v32
    %v34 = vrot.slane %v28, %v33
    %v36 = vmul.f32 %v27, %v34
    %vm37 = vcmask 261120
    %v38 = vsel %vm37, %v36, 0.0
    %39 = vadd.xlane.f32.xlu0 %v38
    %v40 = vpop.xlane.xlu0 %39
    %v41 = vstv %s29
    %v42 = vadd.f32 %v40, %v41
    %vm43 = vcmask 7168
    %44 = vst.msk [vmem:[%s3] sm:$0xff] %vm43, %v42
    // Predicated region
    $region18: #{tpu_custom_call.1} parent=1 // pred_check
      _
    $region19: #{tpu_custom_call.1} parent=1 // pred_check_branch
      %46 = sbr.rel (0) target = $region21
    $region20: #{tpu_custom_call.1} parent=1 // pred_region
      _
    $region21: #{tpu_custom_call.1} parent=1 // pred_fallthru
      _
    // Predicated region
    $region22: #{tpu_custom_call.1} parent=1 // pred_check
      _
    $region23: #{tpu_custom_call.1} parent=1 // pred_check_branch
      %48 = sbr.rel (0) target = $region25
    $region24: #{tpu_custom_call.1} parent=1 // pred_region
      _
    $region25: #{tpu_custom_call.1} parent=1 // pred_fallthru
      _
    %49 = vsyncpa [#allocation4], 1

</llo_original>
